<compile_context>
chip_gen: v6e
topology: v6e:2x2x1
jax: 0.10.0
libtpu: 0.0.40
codegen_flags: <defaults>
</compile_context>

<pallas_src>
import math

import jax
import jax.numpy as jnp
import numpy as np
from jax.experimental import pallas as pl
from jax.experimental.pallas import tpu as pltpu

_NEG_INF = float("-inf")


def _pm_kernel(feats_ref, w_ref, b_ref, banks_ref, int_ref,
               cfn_ref, scores_ref, cfn_c_ref):
    """Grid = (batch, bank 0..3, N-tile).

    feats_ref  : (1, Cin, HW)      f32
    w_ref      : (Cout, Cin)       f32
    b_ref      : (Cout, 1)         f32
    banks_ref  : (1, 1, TN, Cout)  corr dtype (one tile of one reference bank)
    int_ref    : (1, 2, Cout)      corr dtype (int_bg, int_fg)
    cfn_ref    : (1, Cout, HW)     f32 output (normalized conv feats)
    scores_ref : (1, 8, HW)        f32 output (resident accumulator per batch)
    cfn_c_ref  : (Cout, HW)        corr-dtype scratch (reused across bank/N steps)
    """
    k = pl.program_id(1)          # which reference bank (0..3)
    n = pl.program_id(2)          # which tile of reference pixels
    hw = scores_ref.shape[2]

    # ---- first inner step for this batch: 1x1 conv + L2 norm + one-pixel scores ----
    @pl.when((k == 0) & (n == 0))
    def _():
        x = feats_ref[0]                                                   # (Cin, HW)
        conv = jnp.dot(w_ref[...], x,
                       preferred_element_type=jnp.float32) + b_ref[...]    # (Cout, HW)
        # L2 norm over channels (sublane reduce) + rsqrt on the EUP slot.
        inv = jax.lax.rsqrt(jnp.sum(conv * conv, axis=0, keepdims=True))   # (1, HW)
        cfn = conv * inv
        cfn_ref[0] = cfn.astype(cfn_ref.dtype)
        cfn_c = cfn.astype(cfn_c_ref.dtype)
        cfn_c_ref[...] = cfn_c

        # "int" one-pixel correlations: (2, Cout) @ (Cout, HW) -> (2, HW), no max.
        int_s = jnp.dot(int_ref[0], cfn_c, preferred_element_type=jnp.float32)
        scores_ref[0, 0:4, :] = jnp.full((4, hw), _NEG_INF, jnp.float32)   # running maxes
        scores_ref[0, 4:6, :] = int_s
        scores_ref[0, 6:8, :] = jnp.zeros((2, hw), jnp.float32)            # padding rows

    # ---- streaming max over one (TN, Cout) tile of reference bank k ----
    bank_tile = banks_ref[0, 0]                                            # (TN, Cout)
    s = jnp.dot(bank_tile, cfn_c_ref[...],
                preferred_element_type=jnp.float32)                        # (TN, HW)
    tile_max = jnp.max(s, axis=0, keepdims=True)                           # (1, HW)

    rows = jax.lax.broadcasted_iota(jnp.int32, (8, hw), 0)
    cur = scores_ref[0]                                                    # (8, HW)
    scores_ref[0] = jnp.where(rows == k, jnp.maximum(cur, tile_max), cur)


def pixel_level_matching_forward(feats_nchw, weight, bias, pm_state, *,
                                 n_tile=128, corr_dtype=jnp.bfloat16):
    """feats_nchw: (B, Cin, H, W); weight: (Cout, Cin, 1, 1); bias: (Cout,).

    pm_state: {'pm_init': [(B,N,Cout)]*2, 'pm_prev': [(B,N,Cout)]*2,
               'pm_int': [(B,1,Cout)]*2}
    Returns (init_scores, prev_scores, int_scores, conv_feats_norm) in NCHW,
    matching the PyTorch module.
    """
    B, Cin, H, W = feats_nchw.shape
    Cout = weight.shape[0]
    HW = H * W

    # NCHW -> (B, Cin, HW): pure reshape, no HBM transpose round-trip.
    feats = feats_nchw.reshape(B, Cin, HW).astype(jnp.float32)
    w = weight.reshape(Cout, Cin).astype(jnp.float32)
    b = bias.reshape(Cout, 1).astype(jnp.float32)

    init_bg, init_fg = pm_state["pm_init"]
    prev_bg, prev_fg = pm_state["pm_prev"]
    int_bg, int_fg = pm_state["pm_int"]
    N = init_bg.shape[1]

    # Pack the four max-reduced banks into one array; cast to the MXU-native corr dtype.
    banks = jnp.stack([init_bg, init_fg, prev_bg, prev_fg], axis=1).astype(corr_dtype)  # (B,4,N,Cout)
    int_bank = jnp.concatenate([int_bg, int_fg], axis=1).astype(corr_dtype)             # (B,2,Cout)

    # Reference-pixel tile for the streaming max (keeps the (N, HW) score matrix
    # from ever materializing; required at production N/HW for v7x's 64 MiB VMEM).
    if (n_tile is not None and 0 < n_tile <= N and N % n_tile == 0
            and (n_tile % 8 == 0 or n_tile == N)):
        tn = n_tile
    else:
        tn = N
    nt = N // tn

    grid_spec = pltpu.PrefetchScalarGridSpec(
        num_scalar_prefetch=0,
        grid=(B, 4, nt),
        in_specs=[
            pl.BlockSpec((1, Cin, HW), lambda bi, k, n: (bi, 0, 0)),         # feats
            pl.BlockSpec((Cout, Cin), lambda bi, k, n: (0, 0)),              # conv weight
            pl.BlockSpec((Cout, 1), lambda bi, k, n: (0, 0)),                # conv bias
            pl.BlockSpec((1, 1, tn, Cout), lambda bi, k, n: (bi, k, n, 0)),  # packed banks
            pl.BlockSpec((1, 2, Cout), lambda bi, k, n: (bi, 0, 0)),         # int bank
        ],
        out_specs=[
            pl.BlockSpec((1, Cout, HW), lambda bi, k, n: (bi, 0, 0)),        # conv_feats_norm
            pl.BlockSpec((1, 8, HW), lambda bi, k, n: (bi, 0, 0)),           # packed scores
        ],
        scratch_shapes=[pltpu.VMEM((Cout, HW), corr_dtype)],
    )
    out_shapes = (
        jax.ShapeDtypeStruct((B, Cout, HW), jnp.float32),
        jax.ShapeDtypeStruct((B, 8, HW), jnp.float32),
    )

    cfn, scores = pl.pallas_call(
        _pm_kernel,
        out_shape=out_shapes,
        grid_spec=grid_spec,
        compiler_params=pltpu.CompilerParams(
            dimension_semantics=("parallel", "arbitrary", "arbitrary")),
    )(feats, w, b, banks, int_bank)

    conv_feats_norm = cfn.reshape(B, Cout, H, W)          # already channel-major
    init_scores = scores[:, 0:2, :].reshape(B, 2, H, W)
    prev_scores = scores[:, 2:4, :].reshape(B, 2, H, W)
    int_scores = scores[:, 4:6, :].reshape(B, 2, H, W)
    return init_scores, prev_scores, int_scores, conv_feats_norm


def _reference(feats_nchw, weight, bias, pm_state):
    """Pure-JAX f32 reference mirroring the PyTorch forward exactly."""
    B, Cin, H, W = feats_nchw.shape
    Cout = weight.shape[0]
    w2 = weight.reshape(Cout, Cin)
    conv = jnp.einsum('bchw,oc->bohw', feats_nchw, w2) + bias.reshape(1, Cout, 1, 1)
    cfn = conv / jnp.linalg.norm(conv, axis=1, keepdims=True)

    def scores(bg, fg, reduce_max):
        s_bg = jnp.einsum('bchw,bnc->bnhw', cfn, bg)
        s_fg = jnp.einsum('bchw,bnc->bnhw', cfn, fg)
        if reduce_max:
            s_bg = s_bg.max(axis=1, keepdims=True)
            s_fg = s_fg.max(axis=1, keepdims=True)
        return jnp.concatenate([s_bg, s_fg], axis=1)

    return (scores(*pm_state['pm_init'], True),
            scores(*pm_state['pm_prev'], True),
            scores(*pm_state['pm_int'], False),
            cfn)


if __name__ == "__main__":
    B, Cin, Cout, H, W = 2, 8, 32, 16, 16
    N = H * W   # reference-frame pixel count

    key = jax.random.PRNGKey(0)
    k_feat, k_w, k_ibg, k_ifg, k_pbg, k_pfg, k_obg, k_ofg = jax.random.split(key, 8)

    feats = jax.random.normal(k_feat, (B, Cin, H, W), dtype=jnp.float32)

    # Conv2d(in=Cin, out=Cout, k=1): kaiming_uniform_ weight, zero bias (deterministic).
    fan_in = Cin
    bound = math.sqrt(6.0 / fan_in)
    weight = jax.random.uniform(k_w, (Cout, Cin, 1, 1), jnp.float32, -bound, bound)
    bias = jnp.zeros((Cout,), jnp.float32)

    # pm_state: masked reference features (non-negative, like seg-masked normalized feats).
    pm_state = {
        "pm_init": [jnp.abs(jax.random.normal(k_ibg, (B, N, Cout), jnp.float32)) * 0.1,
                    jnp.abs(jax.random.normal(k_ifg, (B, N, Cout), jnp.float32)) * 0.1],
        "pm_prev": [jnp.abs(jax.random.normal(k_pbg, (B, N, Cout), jnp.float32)) * 0.1,
                    jnp.abs(jax.random.normal(k_pfg, (B, N, Cout), jnp.float32)) * 0.1],
        "pm_int": [jax.random.normal(k_obg, (B, 1, Cout), jnp.float32),
                   jax.random.normal(k_ofg, (B, 1, Cout), jnp.float32)],
    }

    outs = pixel_level_matching_forward(feats, weight, bias, pm_state)
    outs = jax.block_until_ready(outs)

    refs = _reference(feats, weight, bias, pm_state)
    # Correlations use bf16 operands with f32 accumulation -> looser tolerance for the
    # three score outputs; conv_feats_norm stays f32 end-to-end (tight tolerance).
    tols = [(2e-2, 3e-2),   # init scores
            (2e-2, 3e-2),   # prev scores
            (2e-2, 5e-2),   # int scores (unnormalized pm_int -> larger magnitudes)
            (1e-3, 1e-3)]   # conv_feats_norm
    for o, r, (rt, at) in zip(outs, refs, tols):
        np.testing.assert_allclose(np.asarray(o), np.asarray(r), rtol=rt, atol=at)

    print("KERNEL_OK")
</pallas_src>

<mosaic_0001>
module attributes {stable_mosaic.version = 11 : i64} {
  func.func @_pm_kernel(%arg0: i32, %arg1: i32, %arg2: i32, %arg3: memref<1x8x256xf32, #tpu.memory_space<vmem>>, %arg4: memref<32x8xf32, #tpu.memory_space<vmem>>, %arg5: memref<32x1xf32, #tpu.memory_space<vmem>>, %arg6: memref<1x1x128x32xbf16, #tpu.memory_space<vmem>>, %arg7: memref<1x2x32xbf16, #tpu.memory_space<vmem>>, %arg8: memref<1x32x256xf32, #tpu.memory_space<vmem>>, %arg9: memref<1x8x256xf32, #tpu.memory_space<vmem>>, %arg10: memref<32x256xbf16, #tpu.memory_space<vmem>>) attributes {dimension_semantics = [#tpu.dimension_semantics<parallel>, #tpu.dimension_semantics<arbitrary>, #tpu.dimension_semantics<arbitrary>], iteration_bounds = array<i64: 2, 4, 2>, scalar_prefetch = 0 : i64, scratch_operands = 1 : i64, tpu.core_type = #tpu.core_type<tc>, window_params = [{transform_indices = @transform_0, window_bounds = array<i64: 1, 8, 256>}, {pipeline_mode = #tpu.pipeline_mode<synchronous>, transform_indices = @transform_1, window_bounds = array<i64: 32, 8>}, {pipeline_mode = #tpu.pipeline_mode<synchronous>, transform_indices = @transform_2, window_bounds = array<i64: 32, 1>}, {transform_indices = @transform_3, window_bounds = array<i64: 1, 1, 128, 32>}, {transform_indices = @transform_4, window_bounds = array<i64: 1, 2, 32>}, {transform_indices = @transform_5, window_bounds = array<i64: 1, 32, 256>}, {transform_indices = @transform_6, window_bounds = array<i64: 1, 8, 256>}]} {
    %c0_i32 = arith.constant 0 : i32
    %0 = arith.cmpi eq, %arg1, %c0_i32 : i32
    %c0_i32_0 = arith.constant 0 : i32
    %1 = arith.cmpi eq, %arg2, %c0_i32_0 : i32
    %2 = arith.andi %0, %1 : i1
    %3 = arith.extui %2 : i1 to i32
    %c0_i32_1 = arith.constant 0 : i32
    %4 = arith.cmpi ne, %3, %c0_i32_1 : i32
    scf.if %4 {
      %c0_14 = arith.constant 0 : index
      %c0_15 = arith.constant 0 : index
      %c0_16 = arith.constant 0 : index
      %22 = vector.load %arg3[%c0_14, %c0_15, %c0_16] : memref<1x8x256xf32, #tpu.memory_space<vmem>>, vector<1x8x256xf32>
      %23 = vector.shape_cast %22 : vector<1x8x256xf32> to vector<8x256xf32>
      %c0_17 = arith.constant 0 : index
      %c0_18 = arith.constant 0 : index
      %24 = vector.load %arg4[%c0_17, %c0_18] : memref<32x8xf32, #tpu.memory_space<vmem>>, vector<32x8xf32>
      %cst_19 = arith.constant dense<0.000000e+00> : vector<32x256xf32>
      %25 = tpu.matmul %24, %23, %cst_19 {dimension_numbers = #tpu.dot_dimension_numbers<[1], [0], [0], [1], [0, 0, 1, 1], [], []>} : vector<32x8xf32>, vector<8x256xf32>, vector<32x256xf32> -> vector<32x256xf32>
      %c0_20 = arith.constant 0 : index
      %c0_21 = arith.constant 0 : index
      %26 = vector.load %arg5[%c0_20, %c0_21] : memref<32x1xf32, #tpu.memory_space<vmem>>, vector<32x1xf32>
      %27 = vector.broadcast %26 : vector<32x1xf32> to vector<32x256xf32>
      %28 = arith.addf %25, %27 : vector<32x256xf32>
      %29 = arith.mulf %28, %28 : vector<32x256xf32>
      %cst_22 = arith.constant dense<0.000000e+00> : vector<256xf32>
      %30 = vector.multi_reduction <add>, %29, %cst_22 [0] : vector<32x256xf32> to vector<256xf32>
      %31 = vector.shape_cast %30 : vector<256xf32> to vector<1x256xf32>
      %32 = math.rsqrt %31 : vector<1x256xf32>
      %33 = vector.broadcast %32 : vector<1x256xf32> to vector<32x256xf32>
      %34 = arith.mulf %28, %33 : vector<32x256xf32>
      %c0_23 = arith.constant 0 : index
      %c0_24 = arith.constant 0 : index
      %c0_25 = arith.constant 0 : index
      %35 = vector.load %arg8[%c0_23, %c0_24, %c0_25] : memref<1x32x256xf32, #tpu.memory_space<vmem>>, vector<1x32x256xf32>
      %36 = vector.shape_cast %35 : vector<1x32x256xf32> to vector<32x256xf32>
      %37 = vector.shape_cast %34 : vector<32x256xf32> to vector<1x32x256xf32>
      tpu.vector_store %arg8[%c0_23, %c0_24, %c0_25], %37 {strides = array<i32>} : memref<1x32x256xf32, #tpu.memory_space<vmem>>, vector<1x32x256xf32>,
      %38 = arith.truncf %34 : vector<32x256xf32> to vector<32x256xbf16>
      %c0_26 = arith.constant 0 : index
      %c0_27 = arith.constant 0 : index
      %39 = vector.load %arg10[%c0_26, %c0_27] : memref<32x256xbf16, #tpu.memory_space<vmem>>, vector<32x256xbf16>
      tpu.vector_store %arg10[%c0_26, %c0_27], %38 {strides = array<i32>} : memref<32x256xbf16, #tpu.memory_space<vmem>>, vector<32x256xbf16>,
      %c0_28 = arith.constant 0 : index
      %c0_29 = arith.constant 0 : index
      %c0_30 = arith.constant 0 : index
      %40 = vector.load %arg7[%c0_28, %c0_29, %c0_30] : memref<1x2x32xbf16, #tpu.memory_space<vmem>>, vector<1x2x32xbf16>
      %41 = vector.shape_cast %40 : vector<1x2x32xbf16> to vector<2x32xbf16>
      %cst_31 = arith.constant dense<0.000000e+00> : vector<2x256xf32>
      %42 = tpu.matmul %41, %38, %cst_31 {dimension_numbers = #tpu.dot_dimension_numbers<[1], [0], [0], [1], [0, 0, 1, 1], [], []>} : vector<2x32xbf16>, vector<32x256xbf16>, vector<2x256xf32> -> vector<2x256xf32>
      %cst_32 = arith.constant 0xFF800000 : f32
      %43 = vector.broadcast %cst_32 : f32 to vector<4x256xf32>
      %c0_33 = arith.constant 0 : index
      %c0_34 = arith.constant 0 : index
      %c0_35 = arith.constant 0 : index
      %44 = vector.load %arg9[%c0_33, %c0_34, %c0_35] : memref<1x8x256xf32, #tpu.memory_space<vmem>>, vector<1x4x256xf32>
      %45 = vector.shape_cast %44 : vector<1x4x256xf32> to vector<4x256xf32>
      %46 = vector.shape_cast %43 : vector<4x256xf32> to vector<1x4x256xf32>
      tpu.vector_store %arg9[%c0_33, %c0_34, %c0_35], %46 {strides = array<i32>} : memref<1x8x256xf32, #tpu.memory_space<vmem>>, vector<1x4x256xf32>,
      %c0_36 = arith.constant 0 : index
      %c4 = arith.constant 4 : index
      %c0_37 = arith.constant 0 : index
      %47 = vector.load %arg9[%c0_36, %c4, %c0_37] : memref<1x8x256xf32, #tpu.memory_space<vmem>>, vector<1x2x256xf32>
      %48 = vector.shape_cast %47 : vector<1x2x256xf32> to vector<2x256xf32>
      %49 = vector.shape_cast %42 : vector<2x256xf32> to vector<1x2x256xf32>
      tpu.vector_store %arg9[%c0_36, %c4, %c0_37], %49 {strides = array<i32>} : memref<1x8x256xf32, #tpu.memory_space<vmem>>, vector<1x2x256xf32>,
      %cst_38 = arith.constant 0.000000e+00 : f32
      %50 = vector.broadcast %cst_38 : f32 to vector<2x256xf32>
      %c0_39 = arith.constant 0 : index
      %c6 = arith.constant 6 : index
      %c0_40 = arith.constant 0 : index
      %51 = vector.load %arg9[%c0_39, %c6, %c0_40] : memref<1x8x256xf32, #tpu.memory_space<vmem>>, vector<1x2x256xf32>
      %52 = vector.shape_cast %51 : vector<1x2x256xf32> to vector<2x256xf32>
      %53 = vector.shape_cast %50 : vector<2x256xf32> to vector<1x2x256xf32>
      tpu.vector_store %arg9[%c0_39, %c6, %c0_40], %53 {strides = array<i32>} : memref<1x8x256xf32, #tpu.memory_space<vmem>>, vector<1x2x256xf32>,
    } else {
    }
    %c0 = arith.constant 0 : index
    %c0_2 = arith.constant 0 : index
    %c0_3 = arith.constant 0 : index
    %c0_4 = arith.constant 0 : index
    %5 = vector.load %arg6[%c0, %c0_2, %c0_3, %c0_4] : memref<1x1x128x32xbf16, #tpu.memory_space<vmem>>, vector<1x1x128x32xbf16>
    %6 = vector.shape_cast %5 : vector<1x1x128x32xbf16> to vector<128x32xbf16>
    %c0_5 = arith.constant 0 : index
    %c0_6 = arith.constant 0 : index
    %7 = vector.load %arg10[%c0_5, %c0_6] : memref<32x256xbf16, #tpu.memory_space<vmem>>, vector<32x256xbf16>
    %cst = arith.constant dense<0.000000e+00> : vector<128x256xf32>
    %8 = tpu.matmul %6, %7, %cst {dimension_numbers = #tpu.dot_dimension_numbers<[1], [0], [0], [1], [0, 0, 1, 1], [], []>} : vector<128x32xbf16>, vector<32x256xbf16>, vector<128x256xf32> -> vector<128x256xf32>
    %cst_7 = arith.constant dense<0xFF800000> : vector<256xf32>
    %9 = vector.multi_reduction <maximumf>, %8, %cst_7 [0] : vector<128x256xf32> to vector<256xf32>
    %10 = vector.shape_cast %9 : vector<256xf32> to vector<1x256xf32>
    %11 = tpu.iota {dimensions = array<i32: 0>} : vector<8x256xi32>
    %c0_8 = arith.constant 0 : index
    %c0_9 = arith.constant 0 : index
    %c0_10 = arith.constant 0 : index
    %12 = vector.load %arg9[%c0_8, %c0_9, %c0_10] : memref<1x8x256xf32, #tpu.memory_space<vmem>>, vector<1x8x256xf32>
    %13 = vector.shape_cast %12 : vector<1x8x256xf32> to vector<8x256xf32>
    %14 = vector.broadcast %arg1 : i32 to vector<8x256xi32>
    %15 = arith.cmpi eq, %11, %14 : vector<8x256xi32>
    %16 = vector.broadcast %10 : vector<1x256xf32> to vector<8x256xf32>
    %17 = arith.maximumf %13, %16 : vector<8x256xf32>
    %18 = arith.select %15, %17, %13 : vector<8x256xi1>, vector<8x256xf32>
    %c0_11 = arith.constant 0 : index
    %c0_12 = arith.constant 0 : index
    %c0_13 = arith.constant 0 : index
    %19 = vector.load %arg9[%c0_11, %c0_12, %c0_13] : memref<1x8x256xf32, #tpu.memory_space<vmem>>, vector<1x8x256xf32>
    %20 = vector.shape_cast %19 : vector<1x8x256xf32> to vector<8x256xf32>
    %21 = vector.shape_cast %18 : vector<8x256xf32> to vector<1x8x256xf32>
    tpu.vector_store %arg9[%c0_11, %c0_12, %c0_13], %21 {strides = array<i32>} : memref<1x8x256xf32, #tpu.memory_space<vmem>>, vector<1x8x256xf32>,
    return
  }
  func.func @transform_0(%arg0: i32, %arg1: i32, %arg2: i32) -> (i32, i32, i32) {
    %c0_i32 = arith.constant 0 : i32
    %c0_i32_0 = arith.constant 0 : i32
    %c0_i32_1 = arith.constant 0 : i32
    return %arg0, %c0_i32, %c0_i32_0 : i32, i32, i32
  }
  func.func @transform_1(%arg0: i32, %arg1: i32, %arg2: i32) -> (i32, i32) {
    %c0_i32 = arith.constant 0 : i32
    %c0_i32_0 = arith.constant 0 : i32
    %c0_i32_1 = arith.constant 0 : i32
    return %c0_i32, %c0_i32_0 : i32, i32
  }
  func.func @transform_2(%arg0: i32, %arg1: i32, %arg2: i32) -> (i32, i32) {
    %c0_i32 = arith.constant 0 : i32
    %c0_i32_0 = arith.constant 0 : i32
    %c0_i32_1 = arith.constant 0 : i32
    return %c0_i32, %c0_i32_0 : i32, i32
  }
  func.func @transform_3(%arg0: i32, %arg1: i32, %arg2: i32) -> (i32, i32, i32, i32) {
    %c0_i32 = arith.constant 0 : i32
    %c0_i32_0 = arith.constant 0 : i32
    return %arg0, %arg1, %arg2, %c0_i32 : i32, i32, i32, i32
  }
  func.func @transform_4(%arg0: i32, %arg1: i32, %arg2: i32) -> (i32, i32, i32) {
    %c0_i32 = arith.constant 0 : i32
    %c0_i32_0 = arith.constant 0 : i32
    %c0_i32_1 = arith.constant 0 : i32
    return %arg0, %c0_i32, %c0_i32_0 : i32, i32, i32
  }
  func.func @transform_5(%arg0: i32, %arg1: i32, %arg2: i32) -> (i32, i32, i32) {
    %c0_i32 = arith.constant 0 : i32
    %c0_i32_0 = arith.constant 0 : i32
    %c0_i32_1 = arith.constant 0 : i32
    return %arg0, %c0_i32, %c0_i32_0 : i32, i32, i32
  }
  func.func @transform_6(%arg0: i32, %arg1: i32, %arg2: i32) -> (i32, i32, i32) {
    %c0_i32 = arith.constant 0 : i32
    %c0_i32_0 = arith.constant 0 : i32
    %c0_i32_1 = arith.constant 0 : i32
    return %arg0, %c0_i32, %c0_i32_0 : i32, i32, i32
  }
}

</mosaic_0001>

<llo_original>
// kernel: tpu_custom_call.1
$region0: #{tpu_custom_call.1}
  #allocation0 [shape = 'u32[]', space=smem, size = 0x4, offset = 0x4, fixed_abs, tag = 'smem constant byte address 0x4 - core index']
  #allocation1 [shape = 'u32[144,128]{1,0:T(1,128)}', space=vmem, size = 0x12000, scoped, tag = 'internal scratch']
  #allocation2 [shape = 'bf16[32,256]{1,0:T(8,128)(2,1)}', space=vmem, size = 0x4000, scoped, tag = 'scratch operand']
  %s0 = inlined_call_operand.vmem [shape: f32[2,8,256], index: 0, kind: input, shape index: {}]
  %s1 = inlined_call_operand.vmem [shape: f32[32,8], index: 1, kind: input, shape index: {}]
  %s2 = inlined_call_operand.vmem [shape: f32[32,1], index: 2, kind: input, shape index: {}]
  %s3 = inlined_call_operand.vmem [shape: bf16[2,4,256,32], index: 3, kind: input, shape index: {}]
  %s4 = inlined_call_operand.vmem [shape: bf16[2,2,32], index: 4, kind: input, shape index: {}]
  %s5 = inlined_call_operand.hbm [shape: f32[2,32,256], index: 5, kind: output, shape index: {0}]
  %s6 = inlined_call_operand.hbm [shape: f32[2,8,256], index: 6, kind: output, shape index: {1}]
  %7 = xla_tuple %s5, %s6
  %s8 = sld [smem:[#allocation0]]
  $region65: #{tpu_custom_call.1} parent=0
    _
  %s10 = ssub.s32 1, %s8
  %s11 = scalar_select 0, %s10, %s8
  $region1: #{tpu_custom_call.1} parent=0
    #allocation3 [shape = 'u8[65536]{0}', space=vmem, size = 0x10000, scoped, tag = 'output window, operand 0']
    #allocation4 [shape = 's32[2]{0}', space=sflag, size = 0x8, scoped, tag = 'scoped memory for tpu_custom_call.1']
    #allocation5 [shape = 'u8[16384]{0}', space=vmem, size = 0x4000, scoped, tag = 'output window, operand 1']
    #allocation6 [shape = 's32[2]{0}', space=sflag, size = 0x8, scoped, tag = 'scoped memory for tpu_custom_call.1']
    %12 = vsyncpa [#allocation4], 0
    %s13 = scalar_lea.sflag [#allocation4], 1
    %14 = vsyncpa %s13, 0
    %15 = vsyncpa [#allocation6], 0
    %s16 = scalar_lea.sflag [#allocation6], 1
    %17 = vsyncpa %s16, 0
    loop: start=0, step=1, limit=18
    $region2: #{tpu_custom_call.1} parent=1 // loop_pre_header
      _
    $region3: #{tpu_custom_call.1} parent=1 // loop_header
      %s19 = sphi 0, %s23
      %p20 = scmp.ge.s32.totalorder %s19, 18
      %s26 = sphi 0, %s45
      %s27 = sphi 0, %s41
      %s28 = sphi 0, %s37
      %s29 = sphi 0, %s26
      %s30 = sphi 0, %s27
      %s31 = sphi 0, %s28
      %s32 = sphi 0, %s29
      %s33 = sphi 0, %s30
      %s34 = sphi 0, %s31
      %s48 = sphi 0, %s50
      %s51 = sphi 0, %s48
      %s52 = sphi 0, %s51
      %s68 = sphi 0, %s52
      %s72 = sphi 0, %s72
      %s74 = sphi 0, %s72
      %s75 = sphi 0, %s74
      %s89 = sphi 0, %s75
      %s93 = sphi 0, %s93
      %s95 = sphi 0, %s93
      %s96 = sphi 0, %s95
      %s110 = sphi 0, %s96
      %s120 = sphi 0, %s122
      %s123 = sphi 0, %s120
      %s124 = sphi 0, %s123
      %s140 = sphi 0, %s124
      %s146 = sphi 0, %s148
      %s149 = sphi 0, %s146
      %s150 = sphi 0, %s149
      %s166 = sphi 0, %s150
      %s172 = sphi 0, %s174
      %s175 = sphi 0, %s172
      %s176 = sphi 0, %s175
      %s192 = sphi 0, %s176
      %s198 = sphi 0, %s200
      %s201 = sphi 0, %s198
      %s202 = sphi 0, %s201
      %s218 = sphi 0, %s202
    $region4: #{tpu_custom_call.1} parent=1 // loop_header_branch
      %22 = sbr.rel (%p20) target = $region8
    $region5: #{tpu_custom_call.1} parent=1 // loop_body
      %s24 = ssub.s32 %s19, 1
      %s25 = ssub.s32 %s19, 2
      %s35 = sadd.s32 1, %s28
      %p36 = scmp.ge.s32.totalorder %s35, 2
      %s37 = scalar_select %p36, 0, %s35
      %s38 = sadd.s32 1, %s27
      %s39 = scalar_select %p36, %s38, %s27
      %p40 = scmp.ge.s32.totalorder %s39, 4
      %s41 = scalar_select %p40, 0, %s39
      %s42 = sadd.s32 1, %s26
      %s43 = scalar_select %p40, %s42, %s26
      %p44 = scmp.ge.s32.totalorder %s43, 2
      %s45 = scalar_select %p44, 0, %s43
      %s46 = ssub.s32 %s26, %s45
      %p47 = scmp.eq.s32.totalorder %s46, 0
      %s49 = sadd.s32 %s48, 1
      %s50 = scalar_select %p47, %s48, %s49
      %p53 = pneg %p47
      %p54 = scmp.eq.s32.totalorder %s19, 15
      %p55 = por %p53, %p54
      %p56 = scmp.ne.s32.totalorder %s48, %s51
      %p57 = scmp.eq.s32.totalorder %s19, 0
      %p58 = por %p56, %p57
      %p59 = scmp.ne.s32.totalorder %s48, %s51
      %p60 = scmp.eq.s32.totalorder %s24, 15
      %p61 = por %p59, %p60
      %p62 = scmp.ne.s32.totalorder %s51, %s52
      %p63 = scmp.eq.s32.totalorder %s24, 0
      %p64 = por %p62, %p63
      %p65 = scmp.ne.s32.totalorder %s51, %s52
      %p66 = scmp.eq.s32.totalorder %s25, 15
      %p67 = por %p65, %p66
      %p69 = scmp.ne.s32.totalorder %s52, %s68
      %p70 = scmp.eq.s32.totalorder %s25, 0
      %p71 = por %p69, %p70
      %s73 = sadd.s32 %s72, 1
      %p76 = scmp.eq.s32.totalorder %s19, 15
      %p77 = scmp.ne.s32.totalorder %s72, %s74
      %p78 = scmp.eq.s32.totalorder %s19, 0
      %p79 = por %p77, %p78
      %p80 = scmp.ne.s32.totalorder %s72, %s74
      %p81 = scmp.eq.s32.totalorder %s24, 15
      %p82 = por %p80, %p81
      %p83 = scmp.ne.s32.totalorder %s74, %s75
      %p84 = scmp.eq.s32.totalorder %s24, 0
      %p85 = por %p83, %p84
      %p86 = scmp.ne.s32.totalorder %s74, %s75
      %p87 = scmp.eq.s32.totalorder %s25, 15
      %p88 = por %p86, %p87
      %p90 = scmp.ne.s32.totalorder %s75, %s89
      %p91 = scmp.eq.s32.totalorder %s25, 0
      %p92 = por %p90, %p91
      %s94 = sadd.s32 %s93, 1
      %p97 = scmp.eq.s32.totalorder %s19, 15
      %p98 = scmp.ne.s32.totalorder %s93, %s95
      %p99 = scmp.eq.s32.totalorder %s19, 0
      %p100 = por %p98, %p99
      %p101 = scmp.ne.s32.totalorder %s93, %s95
      %p102 = scmp.eq.s32.totalorder %s24, 15
      %p103 = por %p101, %p102
      %p104 = scmp.ne.s32.totalorder %s95, %s96
      %p105 = scmp.eq.s32.totalorder %s24, 0
      %p106 = por %p104, %p105
      %p107 = scmp.ne.s32.totalorder %s95, %s96
      %p108 = scmp.eq.s32.totalorder %s25, 15
      %p109 = por %p107, %p108
      %p111 = scmp.ne.s32.totalorder %s96, %s110
      %p112 = scmp.eq.s32.totalorder %s25, 0
      %p113 = por %p111, %p112
      %s114 = ssub.s32 %s26, %s45
      %s115 = ssub.s32 %s27, %s41
      %s116 = sor.u32 %s114, %s115
      %s117 = ssub.s32 %s28, %s37
      %s118 = sor.u32 %s116, %s117
      %p119 = scmp.eq.s32.totalorder %s118, 0
      %s121 = sadd.s32 %s120, 1
      %s122 = scalar_select %p119, %s120, %s121
      %p125 = pneg %p119
      %p126 = scmp.eq.s32.totalorder %s19, 15
      %p127 = por %p125, %p126
      %p128 = scmp.ne.s32.totalorder %s120, %s123
      %p129 = scmp.eq.s32.totalorder %s19, 0
      %p130 = por %p128, %p129
      %p131 = scmp.ne.s32.totalorder %s120, %s123
      %p132 = scmp.eq.s32.totalorder %s24, 15
      %p133 = por %p131, %p132
      %p134 = scmp.ne.s32.totalorder %s123, %s124
      %p135 = scmp.eq.s32.totalorder %s24, 0
      %p136 = por %p134, %p135
      %p137 = scmp.ne.s32.totalorder %s123, %s124
      %p138 = scmp.eq.s32.totalorder %s25, 15
      %p139 = por %p137, %p138
      %p141 = scmp.ne.s32.totalorder %s124, %s140
      %p142 = scmp.eq.s32.totalorder %s25, 0
      %p143 = por %p141, %p142
      %s144 = ssub.s32 %s26, %s45
      %p145 = scmp.eq.s32.totalorder %s144, 0
      %s147 = sadd.s32 %s146, 1
      %s148 = scalar_select %p145, %s146, %s147
      %p151 = pneg %p145
      %p152 = scmp.eq.s32.totalorder %s19, 15
      %p153 = por %p151, %p152
      %p154 = scmp.ne.s32.totalorder %s146, %s149
      %p155 = scmp.eq.s32.totalorder %s19, 0
      %p156 = por %p154, %p155
      %p157 = scmp.ne.s32.totalorder %s146, %s149
      %p158 = scmp.eq.s32.totalorder %s24, 15
      %p159 = por %p157, %p158
      %p160 = scmp.ne.s32.totalorder %s149, %s150
      %p161 = scmp.eq.s32.totalorder %s24, 0
      %p162 = por %p160, %p161
      %p163 = scmp.ne.s32.totalorder %s149, %s150
      %p164 = scmp.eq.s32.totalorder %s25, 15
      %p165 = por %p163, %p164
      %p167 = scmp.ne.s32.totalorder %s150, %s166
      %p168 = scmp.eq.s32.totalorder %s25, 0
      %p169 = por %p167, %p168
      %s170 = ssub.s32 %s26, %s45
      %p171 = scmp.eq.s32.totalorder %s170, 0
      %s173 = sadd.s32 %s172, 1
      %s174 = scalar_select %p171, %s172, %s173
      %p177 = pneg %p171
      %p178 = scmp.eq.s32.totalorder %s19, 15
      %p179 = por %p177, %p178
      %p180 = scmp.ne.s32.totalorder %s172, %s175
      %p181 = scmp.eq.s32.totalorder %s19, 0
      %p182 = por %p180, %p181
      %p183 = scmp.ne.s32.totalorder %s172, %s175
      %p184 = scmp.eq.s32.totalorder %s24, 15
      %p185 = por %p183, %p184
      %p186 = scmp.ne.s32.totalorder %s175, %s176
      %p187 = scmp.eq.s32.totalorder %s24, 0
      %p188 = por %p186, %p187
      %p189 = scmp.ne.s32.totalorder %s175, %s176
      %p190 = scmp.eq.s32.totalorder %s25, 15
      %p191 = por %p189, %p190
      %p193 = scmp.ne.s32.totalorder %s176, %s192
      %p194 = scmp.eq.s32.totalorder %s25, 0
      %p195 = por %p193, %p194
      %s196 = ssub.s32 %s26, %s45
      %p197 = scmp.eq.s32.totalorder %s196, 0
      %s199 = sadd.s32 %s198, 1
      %s200 = scalar_select %p197, %s198, %s199
      %p203 = pneg %p197
      %p204 = scmp.eq.s32.totalorder %s19, 15
      %p205 = por %p203, %p204
      %p206 = scmp.ne.s32.totalorder %s198, %s201
      %p207 = scmp.eq.s32.totalorder %s19, 0
      %p208 = por %p206, %p207
      %p209 = scmp.ne.s32.totalorder %s198, %s201
      %p210 = scmp.eq.s32.totalorder %s24, 15
      %p211 = por %p209, %p210
      %p212 = scmp.ne.s32.totalorder %s201, %s202
      %p213 = scmp.eq.s32.totalorder %s24, 0
      %p214 = por %p212, %p213
      %p215 = scmp.ne.s32.totalorder %s201, %s202
      %p216 = scmp.eq.s32.totalorder %s25, 15
      %p217 = por %p215, %p216
      %p219 = scmp.ne.s32.totalorder %s202, %s218
      %p220 = scmp.eq.s32.totalorder %s25, 0
      %p221 = por %p219, %p220
      %p222 = scmp.le.s32.totalorder 1, %s19
      %p223 = scmp.lt.s32.totalorder %s19, 17
      %p224 = pnand %p222, %p223
      %p225 = pneg %p224
      // Predicated region
      $region9: #{tpu_custom_call.1} parent=5 // pred_check
        _
      $region10: #{tpu_custom_call.1} parent=5 // pred_check_branch
        %227 = sbr.rel (%p224) target = $region12
      $region11: #{tpu_custom_call.1} parent=5 // pred_region
        %s228 = ssub.s32 %s19, 1
        // Predicated region
        $region13: #{tpu_custom_call.1} parent=11 // pred_check
          %p229 = pneg %p85
        $region14: #{tpu_custom_call.1} parent=11 // pred_check_branch
          %231 = sbr.rel (%p229) target = $region16
        $region15: #{tpu_custom_call.1} parent=11 // pred_region
          _
        $region16: #{tpu_custom_call.1} parent=11 // pred_fallthru
          _
        // Predicated region
        $region17: #{tpu_custom_call.1} parent=11 // pred_check
          %p232 = pneg %p106
        $region18: #{tpu_custom_call.1} parent=11 // pred_check_branch
          %234 = sbr.rel (%p232) target = $region20
        $region19: #{tpu_custom_call.1} parent=11 // pred_region
          _
        $region20: #{tpu_custom_call.1} parent=11 // pred_fallthru
          _
      $region12: #{tpu_custom_call.1} parent=5 // pred_fallthru
        _
      %p235 = scmp.lt.s32.totalorder %s19, 16
      // Predicated region
      $region21: #{tpu_custom_call.1} parent=5 // pred_check
        %p236 = pneg %p235
      $region22: #{tpu_custom_call.1} parent=5 // pred_check_branch
        %238 = sbr.rel (%p236) target = $region24
      $region23: #{tpu_custom_call.1} parent=5 // pred_region
        // Predicated region
        $region25: #{tpu_custom_call.1} parent=23 // pred_check
          %p239 = pneg %p58
        $region26: #{tpu_custom_call.1} parent=23 // pred_check_branch
          %241 = sbr.rel (%p239) target = $region28
        $region27: #{tpu_custom_call.1} parent=23 // pred_region
          %p242 = scmp.lt.s32.totalorder %s26, 1
          %s243 = scalar_select %p242, %s26, 1
          %s244 = smul.addr %s243, 2
          %s245 = smul.addr %s244, 8
          %s246 = scalar_lea.vmem %s0, %s245
        $region28: #{tpu_custom_call.1} parent=23 // pred_fallthru
          _
        // Predicated region
        $region29: #{tpu_custom_call.1} parent=23 // pred_check
          %p247 = pneg %p130
        $region30: #{tpu_custom_call.1} parent=23 // pred_check_branch
          %249 = sbr.rel (%p247) target = $region32
        $region31: #{tpu_custom_call.1} parent=23 // pred_region
          %s250 = smul.u32 16, %s28
          %p251 = scmp.lt.s32.totalorder %s26, 1
          %s252 = scalar_select %p251, %s26, 1
          %p253 = scmp.lt.s32.totalorder %s27, 3
          %s254 = scalar_select %p253, %s27, 3
          %p255 = scmp.lt.s32.totalorder %s250, 31
          %s256 = scalar_select %p255, %s250, 31
          %s257 = smul.addr %s254, 32
          %s258 = sadd.s32 %s256, %s257
          %s259 = smul.addr %s252, 128
          %s260 = sadd.s32 %s258, %s259
          %s261 = smul.addr %s260, 4
          %s262 = scalar_lea.vmem %s3, %s261
          %s263 = smul.u32 16, %s28
        $region32: #{tpu_custom_call.1} parent=23 // pred_fallthru
          _
        // Predicated region
        $region33: #{tpu_custom_call.1} parent=23 // pred_check
          %p264 = pneg %p156
        $region34: #{tpu_custom_call.1} parent=23 // pred_check_branch
          %266 = sbr.rel (%p264) target = $region36
        $region35: #{tpu_custom_call.1} parent=23 // pred_region
          %p267 = scmp.lt.s32.totalorder %s26, 1
          %s268 = scalar_select %p267, %s26, 1
          %s269 = scalar_lea.vmem %s4, %s268
        $region36: #{tpu_custom_call.1} parent=23 // pred_fallthru
          _
      $region24: #{tpu_custom_call.1} parent=5 // pred_fallthru
        _
      %p270 = scmp.le.s32.totalorder 1, %s19
      %p271 = scmp.lt.s32.totalorder %s19, 17
      %p272 = pnand %p270, %p271
      %p273 = pneg %p272
      // Predicated region
      $region37: #{tpu_custom_call.1} parent=5 // pred_check
        _
      $region38: #{tpu_custom_call.1} parent=5 // pred_check_branch
        %275 = sbr.rel (%p272) target = $region40
      $region39: #{tpu_custom_call.1} parent=5 // pred_region
        %s276 = ssub.s32 %s19, 1
        %p277 = scmp.lt.s32.totalorder %s29, 1
        %s278 = scalar_select %p277, %s29, 1
        %s279 = smul.addr %s278, 2
        %s280 = smul.addr %s279, 8
        %s281 = scalar_lea.vmem %s0, %s280
        %p282 = pneg %p64
        %p283 = pneg %p61
        %p284 = pneg %p85
        %p285 = pneg %p82
        %p286 = pneg %p106
        %p287 = pneg %p103
        %s288 = smul.u32 16, %s31
        %p289 = scmp.lt.s32.totalorder %s29, 1
        %s290 = scalar_select %p289, %s29, 1
        %p291 = scmp.lt.s32.totalorder %s30, 3
        %s292 = scalar_select %p291, %s30, 3
        %p293 = scmp.lt.s32.totalorder %s288, 31
        %s294 = scalar_select %p293, %s288, 31
        %s295 = smul.addr %s292, 32
        %s296 = sadd.s32 %s294, %s295
        %s297 = smul.addr %s290, 128
        %s298 = sadd.s32 %s296, %s297
        %s299 = smul.addr %s298, 4
        %s300 = scalar_lea.vmem %s3, %s299
        %p301 = pneg %p136
        %p302 = pneg %p133
        %p303 = scmp.lt.s32.totalorder %s29, 1
        %s304 = scalar_select %p303, %s29, 1
        %s305 = scalar_lea.vmem %s4, %s304
        %p306 = pneg %p162
        %p307 = pneg %p159
        %p308 = pneg %p188
        %p309 = pneg %p185
        %s310 = sand.u32 %s175, 1
        %s311 = scalar_lea.sflag [#allocation4], %s310
        %s312 = sand.u32 %s175, 1
        %s313 = smul.addr %s312, 64
        %s314 = scalar_lea.vmem [#allocation3], %s313
        %p315 = pneg %p214
        %p316 = pneg %p211
        %s317 = sand.u32 %s201, 1
        %s318 = scalar_lea.sflag [#allocation6], %s317
        %s319 = sand.u32 %s201, 1
        %s320 = smul.addr %s319, 16
        %s321 = scalar_lea.vmem [#allocation5], %s320
        %p322 = scmp.lt.s32.totalorder %s29, 1
        %s323 = scalar_select %p322, %s29, 1
        %s324 = smul.addr %s323, 2
        %s325 = smul.addr %s324, 8
        %s326 = scalar_lea.vmem %s0, %s325
        %s327 = smul.u32 16, %s31
        %p328 = scmp.lt.s32.totalorder %s29, 1
        %s329 = scalar_select %p328, %s29, 1
        %p330 = scmp.lt.s32.totalorder %s30, 3
        %s331 = scalar_select %p330, %s30, 3
        %p332 = scmp.lt.s32.totalorder %s327, 31
        %s333 = scalar_select %p332, %s327, 31
        %s334 = smul.addr %s331, 32
        %s335 = sadd.s32 %s333, %s334
        %s336 = smul.addr %s329, 128
        %s337 = sadd.s32 %s335, %s336
        %s338 = smul.addr %s337, 4
        %s339 = scalar_lea.vmem %s3, %s338
        %s340 = smul.u32 16, %s31
        %p341 = scmp.lt.s32.totalorder %s29, 1
        %s342 = scalar_select %p341, %s29, 1
        %s343 = scalar_lea.vmem %s4, %s342
        %p345 = scmp.eq.s32.totalorder %s30, 0
        %p346 = scmp.eq.s32.totalorder %s31, 0
        %p347 = pnand %p345, %p346
        %p348 = pneg %p347
        // Predicated region
        $region41: #{tpu_custom_call.1} parent=39 // pred_check
          _
        $region42: #{tpu_custom_call.1} parent=39 // pred_check_branch
          %350 = sbr.rel (%p347) target = $region44
        $region43: #{tpu_custom_call.1} parent=39 // pred_region
          %v351 = vld [vmem:[%s326] sm:$0xff]
          %v352 = vld [vmem:[%s326 + $0x8] sm:$0xff]
          %v353 = vld [vmem:[%s1] sm:$0xff]
          %v354 = vld [vmem:[%s1 + $0x8] sm:$0xff]
          %v355 = vld [vmem:[%s1 + $0x10] sm:$0xff]
          %v356 = vld [vmem:[%s1 + $0x18] sm:$0xff]
          %v357 = vld [vmem:[%s2] sm:$0xff]
          %v358 = vld [vmem:[%s2 + $0x8] sm:$0xff]
          %v359 = vld [vmem:[%s2 + $0x10] sm:$0xff]
          %v360 = vld [vmem:[%s2 + $0x18] sm:$0xff]
          %362 = vset.pattern.permute.xlu0 0
          %363 = vperm.xlu0 %362, %v357
          %v364 = vpop.permute.xlu0 %363
          %367 = vset.pattern.permute.xlu0 0
          %368 = vperm.xlu0 %367, %v358
          %v369 = vpop.permute.xlu0 %368
          %372 = vset.pattern.permute.xlu0 0
          %373 = vperm.xlu0 %372, %v359
          %v374 = vpop.permute.xlu0 %373
          %377 = vset.pattern.permute.xlu0 0
          %378 = vperm.xlu0 %377, %v360
          %v379 = vpop.permute.xlu0 %378
          %vm381 = vcmask 64512
          %v383 = vsel %vm381, %v353, 0
          %v386 = vsel %vm381, %v354, 0
          %v389 = vsel %vm381, %v355, 0
          %v392 = vsel %vm381, %v356, 0
          %394 = vmatprep.subr.mxu0 0.0
          %395 = vmatpush1.msra.mxu0 0.0
          %396 = vmatprep.subr.mxu0 0.0
          %397 = vmatpush1.msra.mxu0 0.0
          %398 = vmatprep.subr.mxu0 0.0
          %399 = vmatpush1.msra.mxu0 0.0
          %400 = vmatprep.subr.mxu0 0.0
          %401 = vmatpush1.msra.mxu0 0.0
          %402 = vmatprep.subr.mxu0 0.0
          %403 = vmatpush1.msra.mxu0 0.0
          %404 = vmatprep.subr.mxu0 0.0
          %405 = vmatpush1.msra.mxu0 0.0
          %406 = vmatprep.subr.mxu0 0.0
          %407 = vmatpush1.msra.mxu0 0.0
          %408 = vmatprep.subr.mxu0 0.0
          %409 = vmatpush1.msra.mxu0 0.0
          %410 = vmatprep.subr.mxu0 0.0
          %411 = vmatpush1.msra.mxu0 0.0
          %412 = vmatprep.subr.mxu0 0.0
          %413 = vmatpush1.msra.mxu0 0.0
          %414 = vmatprep.subr.mxu0 0.0
          %415 = vmatpush1.msra.mxu0 0.0
          %416 = vmatprep.subr.mxu0 0.0
          %417 = vmatpush1.msra.mxu0 0.0
          %418 = vmatprep.subr.mxu0 0.0
          %419 = vmatpush1.msra.mxu0 0.0
          %420 = vmatprep.subr.mxu0 0.0
          %421 = vmatpush1.msra.mxu0 0.0
          %422 = vmatprep.subr.mxu0 0.0
          %423 = vmatpush1.msra.mxu0 0.0
          %424 = vmatprep.subr.mxu0 %v352
          %425 = vmatpush1.msra.mxu0 %v351
          %426 = vmatprep.subr.mxu0 0.0
          %427 = vmatpush2.msra.mxu0 0.0
          %428 = vmatprep.subr.mxu0 0.0
          %429 = vmatpush2.msra.mxu0 0.0
          %430 = vmatprep.subr.mxu0 0.0
          %431 = vmatpush2.msra.mxu0 0.0
          %432 = vmatprep.subr.mxu0 0.0
          %433 = vmatpush2.msra.mxu0 0.0
          %434 = vmatprep.subr.mxu0 0.0
          %435 = vmatpush2.msra.mxu0 0.0
          %436 = vmatprep.subr.mxu0 0.0
          %437 = vmatpush2.msra.mxu0 0.0
          %438 = vmatprep.subr.mxu0 0.0
          %439 = vmatpush2.msra.mxu0 0.0
          %440 = vmatprep.subr.mxu0 0.0
          %441 = vmatpush2.msra.mxu0 0.0
          %442 = vmatprep.subr.mxu0 0.0
          %443 = vmatpush2.msra.mxu0 0.0
          %444 = vmatprep.subr.mxu0 0.0
          %445 = vmatpush2.msra.mxu0 0.0
          %446 = vmatprep.subr.mxu0 0.0
          %447 = vmatpush2.msra.mxu0 0.0
          %448 = vmatprep.subr.mxu0 0.0
          %449 = vmatpush2.msra.mxu0 0.0
          %450 = vmatprep.subr.mxu0 0.0
          %451 = vmatpush2.msra.mxu0 0.0
          %452 = vmatprep.subr.mxu0 0.0
          %453 = vmatpush2.msra.mxu0 0.0
          %454 = vmatprep.subr.mxu0 0.0
          %455 = vmatpush2.msra.mxu0 0.0
          %456 = vmatprep.subr.mxu0 0.0
          %457 = vmatpush2.msra.mxu0 0.0
          %458 = vmatprep.mubr.f32.mxu0 0.0
          %459 = vmatmul.mubr.f32.gmra.mxu0 %v383
          %v460 = vpop.f32.mrf.mxu0
          %v461 = vadd.f32 %v364, %v460
          %v462 = vpop.f32.mrf.mxu0
          %v463 = vadd.f32 %v364, %v462
          %464 = vmatprep.mubr.f32.mxu0 0.0
          %465 = vmatmul.mubr.f32.gmra.mxu0 %v386
          %v466 = vpop.f32.mrf.mxu0
          %v467 = vadd.f32 %v369, %v466
          %v468 = vpop.f32.mrf.mxu0
          %v469 = vadd.f32 %v369, %v468
          %470 = vmatprep.mubr.f32.mxu0 0.0
          %471 = vmatmul.mubr.f32.gmra.mxu0 %v389
          %v472 = vpop.f32.mrf.mxu0
          %v473 = vadd.f32 %v374, %v472
          %v474 = vpop.f32.mrf.mxu0
          %v475 = vadd.f32 %v374, %v474
          %476 = vmatprep.mubr.f32.mxu0 0.0
          %477 = vmatmul.mubr.f32.gmra.mxu0 %v392
          %v478 = vpop.f32.mrf.mxu0
          %v479 = vadd.f32 %v379, %v478
          %v480 = vpop.f32.mrf.mxu0
          %v481 = vadd.f32 %v379, %v480
          %482 = vdwg.mxu0
          %v483 = vmul.f32 %v461, %v461
          %v484 = vmul.f32 %v463, %v463
          %v485 = vmul.f32 %v467, %v467
          %v486 = vmul.f32 %v469, %v469
          %v487 = vmul.f32 %v473, %v473
          %v488 = vmul.f32 %v475, %v475
          %v489 = vmul.f32 %v479, %v479
          %v490 = vmul.f32 %v481, %v481
          %v491 = vadd.f32 %v483, %v485
          %v492 = vadd.f32 %v491, %v487
          %v493 = vadd.f32 %v492, %v489
          %v494 = vrot.slane %v493, 4
          %v495 = vadd.f32 %v493, %v494
          %v496 = vrot.slane %v495, 2
          %v497 = vadd.f32 %v495, %v496
          %v498 = vrot.slane %v497, 1
          %v499 = vadd.f32 %v497, %v498
          %v500 = vadd.f32 %v484, %v486
          %v501 = vadd.f32 %v500, %v488
          %v502 = vadd.f32 %v501, %v490
          %v503 = vrot.slane %v502, 4
          %v504 = vadd.f32 %v502, %v503
          %v505 = vrot.slane %v504, 2
          %v506 = vadd.f32 %v504, %v505
          %v507 = vrot.slane %v506, 1
          %v508 = vadd.f32 %v506, %v507
          %v509 = vrsqrt.pop %v499
          %v510 = vrsqrt.pop %v508
          %v511 = vmul.f32 %v461, %v509
          %v512 = vmul.f32 %v463, %v510
          %v513 = vmul.f32 %v467, %v509
          %v514 = vmul.f32 %v469, %v510
          %v515 = vmul.f32 %v473, %v509
          %v516 = vmul.f32 %v475, %v510
          %v517 = vmul.f32 %v479, %v509
          %v518 = vmul.f32 %v481, %v510
          %519 = vst [vmem:[%s314] sm:$0xff] %v511
          %520 = vst [vmem:[%s314 + $0x8] sm:$0xff] %v512
          %521 = vst [vmem:[%s314 + $0x10] sm:$0xff] %v513
          %522 = vst [vmem:[%s314 + $0x18] sm:$0xff] %v514
          %523 = vst [vmem:[%s314 + $0x20] sm:$0xff] %v515
          %524 = vst [vmem:[%s314 + $0x28] sm:$0xff] %v516
          %525 = vst [vmem:[%s314 + $0x30] sm:$0xff] %v517
          %526 = vst [vmem:[%s314 + $0x38] sm:$0xff] %v518
          %v527 = vpack.c.bf16 %v513, %v511
          %v528 = vpack.c.bf16 %v514, %v512
          %v529 = vpack.c.bf16 %v517, %v515
          %v530 = vpack.c.bf16 %v518, %v516
          %v535 = vunpack.c.l.b16 %v527
          %v536 = vunpack.c.l.b16 %v528
          %v537 = vunpack.c.h.b16 %v527
          %v538 = vunpack.c.h.b16 %v528
          %v539 = vunpack.c.l.b16 %v529
          %v540 = vunpack.c.l.b16 %v530
          %v541 = vunpack.c.h.b16 %v529
          %v542 = vunpack.c.h.b16 %v530
          %v543 = vpack.c.b16 %v536, %v535
          %v544 = vpack.c.b16 %v538, %v537
          %v545 = vpack.c.b16 %v540, %v539
          %v546 = vpack.c.b16 %v542, %v541
          %551 = vst [vmem:[#allocation2] sm:$0xff] %v543
          %552 = vst [vmem:[#allocation2 + $0x8] sm:$0xff] %v544
          %553 = vst [vmem:[#allocation2 + $0x10] sm:$0xff] %v545
          %554 = vst [vmem:[#allocation2 + $0x18] sm:$0xff] %v546
          %v555 = vld [vmem:[%s343] sm:$0x1]
          %vm556 = vcmask 261120
          %v558 = vsel %vm556, %v555, 0
          %560 = vmatprep.subr.bf16.mxu0 0
          %561 = vmatpush1.bf16.msra.mxu0 0
          %562 = vmatprep.subr.bf16.mxu0 0
          %563 = vmatpush1.bf16.msra.mxu0 0
          %564 = vmatprep.subr.bf16.mxu0 0
          %565 = vmatpush1.bf16.msra.mxu0 0
          %566 = vmatprep.subr.bf16.mxu0 0
          %567 = vmatpush1.bf16.msra.mxu0 0
          %568 = vmatprep.subr.bf16.mxu0 0
          %569 = vmatpush1.bf16.msra.mxu0 0
          %570 = vmatprep.subr.bf16.mxu0 0
          %571 = vmatpush1.bf16.msra.mxu0 0
          %572 = vmatprep.subr.bf16.mxu0 %v530
          %573 = vmatpush1.bf16.msra.mxu0 %v529
          %574 = vmatprep.subr.bf16.mxu0 %v528
          %575 = vmatpush1.bf16.msra.mxu0 %v527
          %576 = vmatprep.subr.bf16.mxu0 0
          %577 = vmatpush2.bf16.msra.mxu0 0
          %578 = vmatprep.subr.bf16.mxu0 0
          %579 = vmatpush2.bf16.msra.mxu0 0
          %580 = vmatprep.subr.bf16.mxu0 0
          %581 = vmatpush2.bf16.msra.mxu0 0
          %582 = vmatprep.subr.bf16.mxu0 0
          %583 = vmatpush2.bf16.msra.mxu0 0
          %584 = vmatprep.subr.bf16.mxu0 0
          %585 = vmatpush2.bf16.msra.mxu0 0
          %586 = vmatprep.subr.bf16.mxu0 0
          %587 = vmatpush2.bf16.msra.mxu0 0
          %588 = vmatprep.subr.bf16.mxu0 0
          %589 = vmatpush2.bf16.msra.mxu0 0
          %590 = vmatprep.subr.bf16.mxu0 0
          %591 = vmatpush2.bf16.msra.mxu0 0
          %592 = vmatprep.mubr.bf16.mxu0 0
          %593 = vmatmul.mubr.bf16.gmra.mxu0 %v558
          %v594 = vpop.f32.mrf.mxu0
          %v595 = vadd.f32 0.0, %v594
          %v596 = vpop.f32.mrf.mxu0
          %v597 = vadd.f32 0.0, %v596
          %v598 = vpop.f32.mrf.mxu0
          %v599 = vpop.f32.mrf.mxu0
          %600 = vdwg.mxu0
          %601 = vst [vmem:[%s321] sm:$0xf] -inf
          %602 = vst [vmem:[%s321 + $0x8] sm:$0xf] -inf
          %v605 = vrot.slane %v595, 4
          %v606 = vrot.slane %v597, 4
          %609 = vst [vmem:[%s321] sm:$0x30] %v605
          %610 = vst [vmem:[%s321 + $0x8] sm:$0x30] %v606
          %611 = vst [vmem:[%s321] sm:$0xc0] 0.0
          %612 = vst [vmem:[%s321 + $0x8] sm:$0xc0] 0.0
        $region44: #{tpu_custom_call.1} parent=39 // pred_fallthru
          _
        %v613 = vld [vmem:[%s339] sm:$0xf]
        %v614 = vld [vmem:[%s339 + $0x4] sm:$0xf]
        %v615 = vld [vmem:[%s339 + $0x8] sm:$0xf]
        %v616 = vld [vmem:[%s339 + $0xc] sm:$0xf]
        %v617 = vld [vmem:[%s339 + $0x10] sm:$0xf]
        %v618 = vld [vmem:[%s339 + $0x14] sm:$0xf]
        %v619 = vld [vmem:[%s339 + $0x18] sm:$0xf]
        %v620 = vld [vmem:[%s339 + $0x1c] sm:$0xf]
        %v621 = vld [vmem:[%s339 + $0x20] sm:$0xf]
        %v622 = vld [vmem:[%s339 + $0x24] sm:$0xf]
        %v623 = vld [vmem:[%s339 + $0x28] sm:$0xf]
        %v624 = vld [vmem:[%s339 + $0x2c] sm:$0xf]
        %v625 = vld [vmem:[%s339 + $0x30] sm:$0xf]
        %v626 = vld [vmem:[%s339 + $0x34] sm:$0xf]
        %v627 = vld [vmem:[%s339 + $0x38] sm:$0xf]
        %v628 = vld [vmem:[%s339 + $0x3c] sm:$0xf]
        %v629 = vld [vmem:[#allocation2] sm:$0xff]
        %v630 = vld [vmem:[#allocation2 + $0x8] sm:$0xff]
        %v631 = vld [vmem:[#allocation2 + $0x10] sm:$0xff]
        %v632 = vld [vmem:[#allocation2 + $0x18] sm:$0xff]
        %v649 = vunpack.c.l.b16 %v613
        %v650 = vunpack.c.l.b16 %v614
        %v651 = vunpack.c.l.b16 %v615
        %v652 = vunpack.c.l.b16 %v616
        %v653 = vunpack.c.l.b16 %v617
        %v654 = vunpack.c.l.b16 %v618
        %v655 = vunpack.c.l.b16 %v619
        %v656 = vunpack.c.l.b16 %v620
        %v657 = vunpack.c.l.b16 %v621
        %v658 = vunpack.c.l.b16 %v622
        %v659 = vunpack.c.l.b16 %v623
        %v660 = vunpack.c.l.b16 %v624
        %v661 = vunpack.c.l.b16 %v625
        %v662 = vunpack.c.l.b16 %v626
        %v663 = vunpack.c.l.b16 %v627
        %v664 = vunpack.c.l.b16 %v628
        %v665 = vpack.c.b16 %v650, %v649
        %v666 = vpack.c.b16 %v652, %v651
        %v667 = vpack.c.b16 %v654, %v653
        %v668 = vpack.c.b16 %v656, %v655
        %v669 = vpack.c.b16 %v658, %v657
        %v670 = vpack.c.b16 %v660, %v659
        %v671 = vpack.c.b16 %v662, %v661
        %v672 = vpack.c.b16 %v664, %v663
        %v677 = vunpack.c.l.b16 %v629
        %v678 = vunpack.c.h.b16 %v629
        %v679 = vunpack.c.l.b16 %v630
        %v680 = vunpack.c.h.b16 %v630
        %v681 = vunpack.c.l.b16 %v631
        %v682 = vunpack.c.h.b16 %v631
        %v683 = vunpack.c.l.b16 %v632
        %v684 = vunpack.c.h.b16 %v632
        %v685 = vpack.c.b16 %v679, %v677
        %v686 = vpack.c.b16 %v680, %v678
        %v687 = vpack.c.b16 %v683, %v681
        %v688 = vpack.c.b16 %v684, %v682
        %vm693 = vcmask 261120
        %v695 = vsel %vm693, %v665, 0
        %v698 = vsel %vm693, %v666, 0
        %v701 = vsel %vm693, %v667, 0
        %v704 = vsel %vm693, %v668, 0
        %v707 = vsel %vm693, %v669, 0
        %v710 = vsel %vm693, %v670, 0
        %v713 = vsel %vm693, %v671, 0
        %v716 = vsel %vm693, %v672, 0
        %718 = vmatprep.subr.bf16.mxu0 0
        %719 = vmatpush1.bf16.msra.mxu0 0
        %720 = vmatprep.subr.bf16.mxu0 0
        %721 = vmatpush1.bf16.msra.mxu0 0
        %722 = vmatprep.subr.bf16.mxu0 0
        %723 = vmatpush1.bf16.msra.mxu0 0
        %724 = vmatprep.subr.bf16.mxu0 0
        %725 = vmatpush1.bf16.msra.mxu0 0
        %726 = vmatprep.subr.bf16.mxu0 0
        %727 = vmatpush1.bf16.msra.mxu0 0
        %728 = vmatprep.subr.bf16.mxu0 0
        %729 = vmatpush1.bf16.msra.mxu0 0
        %730 = vmatprep.subr.bf16.mxu0 %v688
        %731 = vmatpush1.bf16.msra.mxu0 %v687
        %732 = vmatprep.subr.bf16.mxu0 %v686
        %733 = vmatpush1.bf16.msra.mxu0 %v685
        %734 = vmatprep.subr.bf16.mxu0 0
        %735 = vmatpush2.bf16.msra.mxu0 0
        %736 = vmatprep.subr.bf16.mxu0 0
        %737 = vmatpush2.bf16.msra.mxu0 0
        %738 = vmatprep.subr.bf16.mxu0 0
        %739 = vmatpush2.bf16.msra.mxu0 0
        %740 = vmatprep.subr.bf16.mxu0 0
        %741 = vmatpush2.bf16.msra.mxu0 0
        %742 = vmatprep.subr.bf16.mxu0 0
        %743 = vmatpush2.bf16.msra.mxu0 0
        %744 = vmatprep.subr.bf16.mxu0 0
        %745 = vmatpush2.bf16.msra.mxu0 0
        %746 = vmatprep.subr.bf16.mxu0 0
        %747 = vmatpush2.bf16.msra.mxu0 0
        %748 = vmatprep.subr.bf16.mxu0 0
        %749 = vmatpush2.bf16.msra.mxu0 0
        %750 = vmatprep.mubr.bf16.mxu0 0
        %751 = vmatmul.mubr.bf16.gmra.mxu0 %v695
        %v752 = vpop.f32.mrf.mxu0
        %v753 = vadd.f32 0.0, %v752
        %v754 = vpop.f32.mrf.mxu0
        %v755 = vadd.f32 0.0, %v754
        %v756 = vpop.f32.mrf.mxu0
        %v757 = vadd.f32 0.0, %v756
        %v758 = vpop.f32.mrf.mxu0
        %v759 = vadd.f32 0.0, %v758
        %760 = vmatprep.mubr.bf16.mxu0 0
        %761 = vmatmul.mubr.bf16.gmra.mxu0 %v698
        %v762 = vpop.f32.mrf.mxu0
        %v763 = vadd.f32 0.0, %v762
        %v764 = vpop.f32.mrf.mxu0
        %v765 = vadd.f32 0.0, %v764
        %v766 = vpop.f32.mrf.mxu0
        %v767 = vadd.f32 0.0, %v766
        %v768 = vpop.f32.mrf.mxu0
        %v769 = vadd.f32 0.0, %v768
        %770 = vmatprep.mubr.bf16.mxu0 0
        %771 = vmatmul.mubr.bf16.gmra.mxu0 %v701
        %v772 = vpop.f32.mrf.mxu0
        %v773 = vadd.f32 0.0, %v772
        %v774 = vpop.f32.mrf.mxu0
        %v775 = vadd.f32 0.0, %v774
        %v776 = vpop.f32.mrf.mxu0
        %v777 = vadd.f32 0.0, %v776
        %v778 = vpop.f32.mrf.mxu0
        %v779 = vadd.f32 0.0, %v778
        %780 = vmatprep.mubr.bf16.mxu0 0
        %781 = vmatmul.mubr.bf16.gmra.mxu0 %v704
        %v782 = vpop.f32.mrf.mxu0
        %v783 = vadd.f32 0.0, %v782
        %v784 = vpop.f32.mrf.mxu0
        %v785 = vadd.f32 0.0, %v784
        %v786 = vpop.f32.mrf.mxu0
        %v787 = vadd.f32 0.0, %v786
        %v788 = vpop.f32.mrf.mxu0
        %v789 = vadd.f32 0.0, %v788
        %790 = vmatprep.mubr.bf16.mxu0 0
        %791 = vmatmul.mubr.bf16.gmra.mxu0 %v707
        %v792 = vpop.f32.mrf.mxu0
        %v793 = vadd.f32 0.0, %v792
        %v794 = vpop.f32.mrf.mxu0
        %v795 = vadd.f32 0.0, %v794
        %v796 = vpop.f32.mrf.mxu0
        %v797 = vadd.f32 0.0, %v796
        %v798 = vpop.f32.mrf.mxu0
        %v799 = vadd.f32 0.0, %v798
        %800 = vmatprep.mubr.bf16.mxu0 0
        %801 = vmatmul.mubr.bf16.gmra.mxu0 %v710
        %v802 = vpop.f32.mrf.mxu0
        %v803 = vadd.f32 0.0, %v802
        %v804 = vpop.f32.mrf.mxu0
        %v805 = vadd.f32 0.0, %v804
        %v806 = vpop.f32.mrf.mxu0
        %v807 = vadd.f32 0.0, %v806
        %v808 = vpop.f32.mrf.mxu0
        %v809 = vadd.f32 0.0, %v808
        %810 = vmatprep.mubr.bf16.mxu0 0
        %811 = vmatmul.mubr.bf16.gmra.mxu0 %v713
        %v812 = vpop.f32.mrf.mxu0
        %v813 = vadd.f32 0.0, %v812
        %v814 = vpop.f32.mrf.mxu0
        %v815 = vadd.f32 0.0, %v814
        %v816 = vpop.f32.mrf.mxu0
        %v817 = vadd.f32 0.0, %v816
        %v818 = vpop.f32.mrf.mxu0
        %v819 = vadd.f32 0.0, %v818
        %820 = vmatprep.mubr.bf16.mxu0 0
        %821 = vmatmul.mubr.bf16.gmra.mxu0 %v716
        %v822 = vpop.f32.mrf.mxu0
        %v823 = vadd.f32 0.0, %v822
        %v824 = vpop.f32.mrf.mxu0
        %v825 = vadd.f32 0.0, %v824
        %v826 = vpop.f32.mrf.mxu0
        %v827 = vadd.f32 0.0, %v826
        %v828 = vpop.f32.mrf.mxu0
        %v829 = vadd.f32 0.0, %v828
        %830 = vdwg.mxu0
        %v831 = vmax.f32 %v753, %v763
        %v832 = vmax.f32 %v757, %v767
        %v833 = vmax.f32 %v831, %v773
        %v834 = vmax.f32 %v832, %v777
        %v835 = vmax.f32 %v833, %v783
        %v836 = vmax.f32 %v834, %v787
        %v837 = vmax.f32 %v835, %v793
        %v838 = vmax.f32 %v836, %v797
        %v839 = vmax.f32 %v837, %v803
        %v840 = vmax.f32 %v838, %v807
        %v841 = vmax.f32 %v839, %v813
        %v842 = vmax.f32 %v840, %v817
        %v843 = vmax.f32 %v841, %v823
        %v844 = vmax.f32 %v842, %v827
        %v845 = vmax.f32 %v843, %v844
        %v846 = vrot.slane %v845, 4
        %v847 = vmax.f32 %v845, %v846
        %v848 = vrot.slane %v847, 2
        %v849 = vmax.f32 %v847, %v848
        %v850 = vrot.slane %v849, 1
        %v851 = vmax.f32 %v849, %v850
        %v852 = vmax.f32 %v755, %v765
        %v853 = vmax.f32 %v759, %v769
        %v854 = vmax.f32 %v852, %v775
        %v855 = vmax.f32 %v853, %v779
        %v856 = vmax.f32 %v854, %v785
        %v857 = vmax.f32 %v855, %v789
        %v858 = vmax.f32 %v856, %v795
        %v859 = vmax.f32 %v857, %v799
        %v860 = vmax.f32 %v858, %v805
        %v861 = vmax.f32 %v859, %v809
        %v862 = vmax.f32 %v860, %v815
        %v863 = vmax.f32 %v861, %v819
        %v864 = vmax.f32 %v862, %v825
        %v865 = vmax.f32 %v863, %v829
        %v866 = vmax.f32 %v864, %v865
        %v867 = vrot.slane %v866, 4
        %v868 = vmax.f32 %v866, %v867
        %v869 = vrot.slane %v868, 2
        %v870 = vmax.f32 %v868, %v869
        %v871 = vrot.slane %v870, 1
        %v872 = vmax.f32 %v870, %v871
        %v873 = vlaneseq
        %v874 = vshrl.u32 %v873, 7
        %v875 = vld [vmem:[%s321] sm:$0xff]
        %v876 = vld [vmem:[%s321 + $0x8] sm:$0xff]
        %v877 = vstv %s30
        %vm878 = vcmp.eq.s32.totalorder %v874, %v877
        %v879 = vmax.f32 %v875, %v851
        %v880 = vmax.f32 %v876, %v872
        %v881 = vsel %vm878, %v879, %v875
        %v882 = vsel %vm878, %v880, %v876
        %883 = vst [vmem:[%s321] sm:$0xff] %v881
        %884 = vst [vmem:[%s321 + $0x8] sm:$0xff] %v882
        %s885 = sand.u32 %s175, 1
        %s886 = scalar_lea.sflag [#allocation4], %s885
        %s887 = sand.u32 %s175, 1
        %s888 = smul.addr %s887, 64
        %s889 = scalar_lea.vmem [#allocation3], %s888
        %s890 = sand.u32 %s201, 1
        %s891 = scalar_lea.sflag [#allocation6], %s890
        %s892 = sand.u32 %s201, 1
        %s893 = smul.addr %s892, 16
        %s894 = scalar_lea.vmem [#allocation5], %s893
        // Predicated region
        $region45: #{tpu_custom_call.1} parent=39 // pred_check
          %p895 = pneg %p185
        $region46: #{tpu_custom_call.1} parent=39 // pred_check_branch
          %897 = sbr.rel (%p895) target = $region48
        $region47: #{tpu_custom_call.1} parent=39 // pred_region
          %s899 = ssub.s32 1024, 1024
          %900 = vsyncadd %s886, %s899
          %s901 = smul.addr %s29, 8
          %s902 = smul.addr %s901, 128
          %s903 = scalar_lea.hbm %s5, %s902
          %s904 = sshll.u32 %s889, 4
          %s905 = int_to_ptr.vmem [resolvable:$true] %s904
          %910 = dma.vmem_to_hbm [thread:$0]  %s905, 1024, %s903, %s886, 256, 256, 16
        $region48: #{tpu_custom_call.1} parent=39 // pred_fallthru
          _
        // Predicated region
        $region49: #{tpu_custom_call.1} parent=39 // pred_check
          %p911 = pneg %p211
        $region50: #{tpu_custom_call.1} parent=39 // pred_check_branch
          %913 = sbr.rel (%p911) target = $region52
        $region51: #{tpu_custom_call.1} parent=39 // pred_region
          %s915 = ssub.s32 256, 256
          %916 = vsyncadd %s891, %s915
          %s917 = smul.addr %s29, 2
          %s918 = smul.addr %s917, 128
          %s919 = scalar_lea.hbm %s6, %s918
          %s921 = sshll.u32 %s894, 4
          %s922 = int_to_ptr.vmem [resolvable:$true] %s921
          %924 = dma.vmem_to_hbm [thread:$0]  %s922, 256, %s919, %s891
        $region52: #{tpu_custom_call.1} parent=39 // pred_fallthru
          _
      $region40: #{tpu_custom_call.1} parent=5 // pred_fallthru
        _
      %p925 = scmp.le.s32.totalorder 2, %s19
      // Predicated region
      $region53: #{tpu_custom_call.1} parent=5 // pred_check
        %p926 = pneg %p925
      $region54: #{tpu_custom_call.1} parent=5 // pred_check_branch
        %928 = sbr.rel (%p926) target = $region56
      $region55: #{tpu_custom_call.1} parent=5 // pred_region
        %s929 = ssub.s32 %s19, 2
        // Predicated region
        $region57: #{tpu_custom_call.1} parent=55 // pred_check
          %p930 = pneg %p191
        $region58: #{tpu_custom_call.1} parent=55 // pred_check_branch
          %932 = sbr.rel (%p930) target = $region60
        $region59: #{tpu_custom_call.1} parent=55 // pred_region
          %s933 = sand.u32 %s176, 1
          %s934 = scalar_lea.sflag [#allocation4], %s933
          %s935 = sand.u32 %s176, 1
          %s936 = smul.addr %s935, 64
          %s937 = scalar_lea.vmem [#allocation3], %s936
          %938 = dma.done %s934, 1024
        $region60: #{tpu_custom_call.1} parent=55 // pred_fallthru
          _
        // Predicated region
        $region61: #{tpu_custom_call.1} parent=55 // pred_check
          %p939 = pneg %p217
        $region62: #{tpu_custom_call.1} parent=55 // pred_check_branch
          %941 = sbr.rel (%p939) target = $region64
        $region63: #{tpu_custom_call.1} parent=55 // pred_region
          %s942 = sand.u32 %s202, 1
          %s943 = scalar_lea.sflag [#allocation6], %s942
          %s944 = sand.u32 %s202, 1
          %s945 = smul.addr %s944, 16
          %s946 = scalar_lea.vmem [#allocation5], %s945
          %947 = dma.done %s943, 256
        $region64: #{tpu_custom_call.1} parent=55 // pred_fallthru
          _
      $region56: #{tpu_custom_call.1} parent=5 // pred_fallthru
        _
    $region6: #{tpu_custom_call.1} parent=1 // loop_footer
      %s23 = sadd.s32 1, %s19
    $region7: #{tpu_custom_call.1} parent=1 // loop_footer_branch
      %18 = sbr.rel target = $region3
    $region8: #{tpu_custom_call.1} parent=1 // loop_exit
      _
    %948 = vsyncpa [#allocation4], 1
    %s949 = scalar_lea.sflag [#allocation4], 1
    %950 = vsyncpa %s949, 1
    %951 = vsyncpa [#allocation6], 1
    %s952 = scalar_lea.sflag [#allocation6], 1
    %953 = vsyncpa %s952, 1

</llo_original>
